<compile_context>
chip_gen: v5e
topology: v5e:2x2
jax: 0.10.0
libtpu: 0.0.40
codegen_flags: <defaults>
</compile_context>

<pallas_src>
import functools

import jax
import jax.numpy as jnp
from jax import lax
from jax.experimental import pallas as pl
from jax.experimental.pallas import tpu as pltpu

LANE = 128      # TPU vreg lane width
SUBLANE = 8     # TPU vreg sublane count (f32)


def _round_up(x, m):
    return ((x + m - 1) // m) * m


def _vmem_capacity_bytes():
    try:
        return int(pltpu.get_tpu_info().vmem_capacity_bytes)
    except Exception:
        return 64 * 1024 * 1024   # v7x per-TC VMEM (smallest of v5e/v6e/v7x)


def _pick_tile_m(m_real, k_pad, c_pad, itemsize, budget_bytes):
    """Largest power-of-two row tile whose double-buffered working set fits the budget."""
    tm = 512  # 512-row tiles reach ~85% of HBM roofline per the Pallas tiling measurements

    def need(t):
        # pass 1: 2x patches-in + 2x y-out + resident weights; pass 2 (smaller) is covered too
        return itemsize * (2 * t * k_pad + 4 * t * c_pad + k_pad * c_pad) + 64 * c_pad

    while tm > SUBLANE and need(tm) > budget_bytes:
        tm //= 2
    # Keep >= 2 grid steps when the problem allows it so the DMA/compute pipeline overlaps.
    tm = min(tm, _round_up(max(m_real // 2, 1), SUBLANE))
    return max(SUBLANE, tm)


def _conv_relu_stats_kernel(p_ref, w_ref, b_ref, y_ref, stat_ref, *, m_real):
    # p_ref   : (TM, K_pad)      im2col patch tile (grid axis 0 tiles M)
    # w_ref   : (K_pad, C_pad)   conv weight, resident across tiles
    # b_ref   : (1, C_pad)       conv bias
    # y_ref   : (TM, C_pad)      conv + bias + ReLU activations (f32)
    # stat_ref: (1, 8, C_pad)    per-tile partials: row 0 = sum(y), row 1 = sum(y*y)
    tm = p_ref.shape[0]
    c_pad = b_ref.shape[1]

    y = jnp.dot(p_ref[...], w_ref[...], preferred_element_type=jnp.float32)
    y = jnp.maximum(y + b_ref[...], 0.0)          # bias + ReLU
    y_ref[...] = y

    # Mask rows that are M-padding so they do not pollute the batch statistics.
    row = lax.broadcasted_iota(jnp.int32, (tm, 1), 0) + pl.program_id(0) * tm
    ym = jnp.where(row < m_real, y, 0.0)
    s = jnp.sum(ym, axis=0, keepdims=True)        # (1, C_pad)
    ss = jnp.sum(ym * ym, axis=0, keepdims=True)  # (1, C_pad)

    # Place sum in sublane 0, sum-of-squares in sublane 1, zeros elsewhere.
    ridx = lax.broadcasted_iota(jnp.int32, (SUBLANE, c_pad), 0)
    stat = jnp.where(ridx == 0, s, 0.0) + jnp.where(ridx == 1, ss, 0.0)
    stat_ref[...] = stat[None]


def _normalize_kernel(y_ref, scale_ref, shift_ref, o_ref):
    # Single fused multiply-add per element; scale/shift precomputed once per channel.
    o_ref[...] = y_ref[...] * scale_ref[...] + shift_ref[...]


def aspp_block_forward(x_nchw, conv_w, conv_b, bn_gamma, bn_beta,
                       *, stride, padding, dilation, eps=1e-5,
                       compute_dtype=jnp.float32):
    """Conv2d(stride, padding, dilation) -> ReLU -> BatchNorm2d (training-mode batch stats)."""
    n, c_in, h, w = x_nchw.shape
    c_out, _, kh, kw = conv_w.shape

    h_out = (h + 2 * padding - dilation * (kh - 1) - 1) // stride + 1
    w_out = (w + 2 * padding - dilation * (kw - 1) - 1) // stride + 1
    m_real = n * h_out * w_out
    k_real = kh * kw * c_in

    # Lane-dense padded problem sizes (no-ops for realistic ASPP channel counts).
    k_pad = _round_up(k_real, LANE)
    c_pad = _round_up(c_out, LANE)

    itemsize = jnp.dtype(compute_dtype).itemsize
    vmem_cap = _vmem_capacity_bytes()
    tm = _pick_tile_m(m_real, k_pad, c_pad, itemsize, budget_bytes=vmem_cap // 4)
    num_tiles = (m_real + tm - 1) // tm
    m_pad = num_tiles * tm

    # ---- glue: NCHW -> NHWC, spatial pad, im2col patch extraction (c_in innermost) ----
    # TODO(synk): turn kh*kw into an 'arbitrary' reduction grid axis over the padded input
    # (scalar-prefetched tap offsets) so the kh*kw-times larger im2col array is never
    # materialized in HBM.
    x_nhwc = jnp.transpose(x_nchw, (0, 2, 3, 1)).astype(jnp.float32)
    x_sp = jnp.pad(x_nhwc, ((0, 0), (padding, padding), (padding, padding), (0, 0)))
    taps = []
    for i in range(kh):
        for j in range(kw):
            taps.append(lax.slice(
                x_sp,
                (0, i * dilation, j * dilation, 0),
                (n,
                 i * dilation + (h_out - 1) * stride + 1,
                 j * dilation + (w_out - 1) * stride + 1,
                 c_in),
                (1, stride, stride, 1)))                        # (n, h_out, w_out, c_in)
    patches = jnp.stack(taps, axis=3).reshape(m_real, k_real)    # (M, K), c_in innermost
    patches = jnp.pad(patches, ((0, m_pad - m_real), (0, k_pad - k_real)))
    patches = patches.astype(compute_dtype)

    # weight: (c_out, c_in, kh, kw) -> (kh, kw, c_in, c_out) -> (K, c_out), zero-padded.
    w_mat = jnp.transpose(conv_w, (2, 3, 1, 0)).reshape(k_real, c_out).astype(jnp.float32)
    w_mat = jnp.pad(w_mat, ((0, k_pad - k_real), (0, c_pad - c_out))).astype(compute_dtype)
    b_vec = jnp.pad(conv_b.astype(jnp.float32), (0, c_pad - c_out)).reshape(1, c_pad)
    g_vec = jnp.pad(bn_gamma.astype(jnp.float32), (0, c_pad - c_out))
    beta_vec = jnp.pad(bn_beta.astype(jnp.float32), (0, c_pad - c_out))

    grid = (num_tiles,)
    cparams = pltpu.CompilerParams(
        dimension_semantics=("parallel",),          # v7x: shard M-tiles across both TCs
        vmem_limit_bytes=int(vmem_cap // 2),
    )

    # ---- pass 1: conv + bias + ReLU, per-tile partial BN statistics ----
    y_flat, partials = pl.pallas_call(
        functools.partial(_conv_relu_stats_kernel, m_real=m_real),
        out_shape=(jax.ShapeDtypeStruct((m_pad, c_pad), jnp.float32),
                   jax.ShapeDtypeStruct((num_tiles, SUBLANE, c_pad), jnp.float32)),
        grid=grid,
        in_specs=[pl.BlockSpec((tm, k_pad), lambda i: (i, 0)),
                  pl.BlockSpec((k_pad, c_pad), lambda i: (0, 0)),
                  pl.BlockSpec((1, c_pad), lambda i: (0, 0))],
        out_specs=(pl.BlockSpec((tm, c_pad), lambda i: (i, 0)),
                   pl.BlockSpec((1, SUBLANE, c_pad), lambda i: (i, 0, 0))),
        compiler_params=cparams,
    )(patches, w_mat, b_vec)

    # ---- glue: finalize per-channel stats once -> fused scale / shift vectors ----
    tot = jnp.sum(partials[:, 0, :], axis=0)
    tot_sq = jnp.sum(partials[:, 1, :], axis=0)
    mean = tot / m_real
    var = jnp.maximum(tot_sq / m_real - mean * mean, 0.0)   # biased variance (PyTorch norm)
    inv = lax.rsqrt(var + eps)
    scale = (g_vec * inv).reshape(1, c_pad)                  # padded channels: gamma=0 -> 0
    shift = (beta_vec - mean * g_vec * inv).reshape(1, c_pad)

    # ---- pass 2: out = y * scale + shift (lane-dense FMA) ----
    out_flat = pl.pallas_call(
        _normalize_kernel,
        out_shape=jax.ShapeDtypeStruct((m_pad, c_pad), jnp.float32),
        grid=grid,
        in_specs=[pl.BlockSpec((tm, c_pad), lambda i: (i, 0)),
                  pl.BlockSpec((1, c_pad), lambda i: (0, 0)),
                  pl.BlockSpec((1, c_pad), lambda i: (0, 0))],
        out_specs=pl.BlockSpec((tm, c_pad), lambda i: (i, 0)),
        compiler_params=cparams,
    )(y_flat, scale, shift)

    # ---- glue: strip padding, back to NCHW ----
    out = out_flat[:m_real, :c_out].reshape(n, h_out, w_out, c_out)
    return jnp.transpose(out, (0, 3, 1, 2))


def _reference(x_nchw, conv_w, conv_b, bn_gamma, bn_beta, *, stride, padding, dilation, eps=1e-5):
    y = lax.conv_general_dilated(
        x_nchw.astype(jnp.float32), conv_w.astype(jnp.float32),
        window_strides=(stride, stride),
        padding=((padding, padding), (padding, padding)),
        rhs_dilation=(dilation, dilation),
        dimension_numbers=("NCHW", "OIHW", "NCHW"),
    ) + conv_b.reshape(1, -1, 1, 1)
    y = jnp.maximum(y, 0.0)
    mean = jnp.mean(y, axis=(0, 2, 3), keepdims=True)
    var = jnp.mean((y - mean) ** 2, axis=(0, 2, 3), keepdims=True)
    return (y - mean) * lax.rsqrt(var + eps) * bn_gamma.reshape(1, -1, 1, 1) \
        + bn_beta.reshape(1, -1, 1, 1)


if __name__ == "__main__":
    # aspp_block(in_c=4, out_c=8, k_size=3, s_size=1, p_size=2, di_size=2)
    in_c, out_c, k_size, s_size, p_size, di_size = 4, 8, 3, 1, 2, 2
    N, H, W = 2, 16, 16

    key = jax.random.PRNGKey(0)
    kx, kw_, kb = jax.random.split(key, 3)
    x = jax.random.normal(kx, (N, in_c, H, W), dtype=jnp.float32)
    conv_w = jax.random.normal(kw_, (out_c, in_c, k_size, k_size), dtype=jnp.float32) * 0.1
    conv_b = jax.random.normal(kb, (out_c,), dtype=jnp.float32) * 0.1
    bn_gamma = jnp.ones((out_c,), dtype=jnp.float32)   # PyTorch BatchNorm2d default weight
    bn_beta = jnp.zeros((out_c,), dtype=jnp.float32)   # PyTorch BatchNorm2d default bias

    fwd = jax.jit(functools.partial(aspp_block_forward,
                                    stride=s_size, padding=p_size, dilation=di_size))
    out = jax.block_until_ready(fwd(x, conv_w, conv_b, bn_gamma, bn_beta))

    ref = _reference(x, conv_w, conv_b, bn_gamma, bn_beta,
                     stride=s_size, padding=p_size, dilation=di_size)
    assert out.shape == ref.shape == (N, out_c, H, W), (out.shape, ref.shape)
    err = float(jnp.max(jnp.abs(out - ref)))
    assert err < 5e-4, err

    print("KERNEL_OK")
</pallas_src>

<mosaic_0001>
module attributes {stable_mosaic.version = 11 : i64} {
  func.func @_conv_relu_stats_kernel(%arg0: i32, %arg1: memref<256x128xf32, #tpu.memory_space<vmem>>, %arg2: memref<128x128xf32, #tpu.memory_space<vmem>>, %arg3: memref<1x128xf32, #tpu.memory_space<vmem>>, %arg4: memref<256x128xf32, #tpu.memory_space<vmem>>, %arg5: memref<1x8x128xf32, #tpu.memory_space<vmem>>) attributes {dimension_semantics = [#tpu.dimension_semantics<parallel>], iteration_bounds = array<i64: 2>, scalar_prefetch = 0 : i64, scratch_operands = 0 : i64, tpu.core_type = #tpu.core_type<tc>, window_params = [{transform_indices = @transform_0, window_bounds = array<i64: 256, 128>}, {pipeline_mode = #tpu.pipeline_mode<synchronous>, transform_indices = @transform_1, window_bounds = array<i64: 128, 128>}, {pipeline_mode = #tpu.pipeline_mode<synchronous>, transform_indices = @transform_2, window_bounds = array<i64: 1, 128>}, {transform_indices = @transform_3, window_bounds = array<i64: 256, 128>}, {transform_indices = @transform_4, window_bounds = array<i64: 1, 8, 128>}]} {
    %c0 = arith.constant 0 : index
    %c0_0 = arith.constant 0 : index
    %0 = vector.load %arg1[%c0, %c0_0] : memref<256x128xf32, #tpu.memory_space<vmem>>, vector<256x128xf32>
    %c0_1 = arith.constant 0 : index
    %c0_2 = arith.constant 0 : index
    %1 = vector.load %arg2[%c0_1, %c0_2] : memref<128x128xf32, #tpu.memory_space<vmem>>, vector<128x128xf32>
    %cst = arith.constant dense<0.000000e+00> : vector<256x128xf32>
    %2 = tpu.matmul %0, %1, %cst {dimension_numbers = #tpu.dot_dimension_numbers<[1], [0], [0], [1], [0, 0, 1, 1], [], []>} : vector<256x128xf32>, vector<128x128xf32>, vector<256x128xf32> -> vector<256x128xf32>
    %c0_3 = arith.constant 0 : index
    %c0_4 = arith.constant 0 : index
    %3 = vector.load %arg3[%c0_3, %c0_4] : memref<1x128xf32, #tpu.memory_space<vmem>>, vector<1x128xf32>
    %4 = vector.broadcast %3 : vector<1x128xf32> to vector<256x128xf32>
    %5 = arith.addf %2, %4 : vector<256x128xf32>
    %cst_5 = arith.constant 0.000000e+00 : f32
    %6 = vector.broadcast %cst_5 : f32 to vector<256x128xf32>
    %7 = arith.maximumf %5, %6 : vector<256x128xf32>
    %c0_6 = arith.constant 0 : index
    %c0_7 = arith.constant 0 : index
    %8 = vector.load %arg4[%c0_6, %c0_7] : memref<256x128xf32, #tpu.memory_space<vmem>>, vector<256x128xf32>
    tpu.vector_store %arg4[%c0_6, %c0_7], %7 {strides = array<i32>} : memref<256x128xf32, #tpu.memory_space<vmem>>, vector<256x128xf32>,
    %9 = tpu.iota {dimensions = array<i32: 0>} : vector<256x1xi32>
    %c256_i32 = arith.constant 256 : i32
    %10 = arith.muli %arg0, %c256_i32 : i32
    %11 = vector.broadcast %10 : i32 to vector<256x1xi32>
    %12 = arith.addi %9, %11 : vector<256x1xi32>
    %c512_i32 = arith.constant 512 : i32
    %13 = vector.broadcast %c512_i32 : i32 to vector<256x1xi32>
    %14 = arith.cmpi slt, %12, %13 : vector<256x1xi32>
    %cst_8 = arith.constant 0.000000e+00 : f32
    %15 = vector.shape_cast %14 : vector<256x1xi1> to vector<256x1xi1>
    %16 = vector.broadcast %15 : vector<256x1xi1> to vector<256x128xi1>
    %17 = vector.broadcast %cst_8 : f32 to vector<256x128xf32>
    %18 = arith.select %16, %7, %17 : vector<256x128xi1>, vector<256x128xf32>
    %cst_9 = arith.constant dense<0.000000e+00> : vector<128xf32>
    %19 = vector.multi_reduction <add>, %18, %cst_9 [0] : vector<256x128xf32> to vector<128xf32>
    %20 = vector.shape_cast %19 : vector<128xf32> to vector<1x128xf32>
    %21 = arith.mulf %18, %18 : vector<256x128xf32>
    %cst_10 = arith.constant dense<0.000000e+00> : vector<128xf32>
    %22 = vector.multi_reduction <add>, %21, %cst_10 [0] : vector<256x128xf32> to vector<128xf32>
    %23 = vector.shape_cast %22 : vector<128xf32> to vector<1x128xf32>
    %24 = tpu.iota {dimensions = array<i32: 0>} : vector<8x128xi32>
    %c0_i32 = arith.constant 0 : i32
    %25 = vector.broadcast %c0_i32 : i32 to vector<8x128xi32>
    %26 = arith.cmpi eq, %24, %25 : vector<8x128xi32>
    %cst_11 = arith.constant 0.000000e+00 : f32
    %27 = vector.shape_cast %20 : vector<1x128xf32> to vector<1x128xf32>
    %28 = vector.broadcast %27 : vector<1x128xf32> to vector<8x128xf32>
    %29 = vector.broadcast %cst_11 : f32 to vector<8x128xf32>
    %30 = arith.select %26, %28, %29 : vector<8x128xi1>, vector<8x128xf32>
    %c1_i32 = arith.constant 1 : i32
    %31 = vector.broadcast %c1_i32 : i32 to vector<8x128xi32>
    %32 = arith.cmpi eq, %24, %31 : vector<8x128xi32>
    %cst_12 = arith.constant 0.000000e+00 : f32
    %33 = vector.shape_cast %23 : vector<1x128xf32> to vector<1x128xf32>
    %34 = vector.broadcast %33 : vector<1x128xf32> to vector<8x128xf32>
    %35 = vector.broadcast %cst_12 : f32 to vector<8x128xf32>
    %36 = arith.select %32, %34, %35 : vector<8x128xi1>, vector<8x128xf32>
    %37 = arith.addf %30, %36 : vector<8x128xf32>
    %38 = vector.shape_cast %37 : vector<8x128xf32> to vector<1x8x128xf32>
    %c0_13 = arith.constant 0 : index
    %c0_14 = arith.constant 0 : index
    %c0_15 = arith.constant 0 : index
    %39 = vector.load %arg5[%c0_13, %c0_14, %c0_15] : memref<1x8x128xf32, #tpu.memory_space<vmem>>, vector<1x8x128xf32>
    tpu.vector_store %arg5[%c0_13, %c0_14, %c0_15], %38 {strides = array<i32>} : memref<1x8x128xf32, #tpu.memory_space<vmem>>, vector<1x8x128xf32>,
    return
  }
  func.func @transform_0(%arg0: i32) -> (i32, i32) {
    %c0_i32 = arith.constant 0 : i32
    %c0_i32_0 = arith.constant 0 : i32
    return %arg0, %c0_i32 : i32, i32
  }
  func.func @transform_1(%arg0: i32) -> (i32, i32) {
    %c0_i32 = arith.constant 0 : i32
    %c0_i32_0 = arith.constant 0 : i32
    %c0_i32_1 = arith.constant 0 : i32
    return %c0_i32, %c0_i32_0 : i32, i32
  }
  func.func @transform_2(%arg0: i32) -> (i32, i32) {
    %c0_i32 = arith.constant 0 : i32
    %c0_i32_0 = arith.constant 0 : i32
    %c0_i32_1 = arith.constant 0 : i32
    return %c0_i32, %c0_i32_0 : i32, i32
  }
  func.func @transform_3(%arg0: i32) -> (i32, i32) {
    %c0_i32 = arith.constant 0 : i32
    %c0_i32_0 = arith.constant 0 : i32
    return %arg0, %c0_i32 : i32, i32
  }
  func.func @transform_4(%arg0: i32) -> (i32, i32, i32) {
    %c0_i32 = arith.constant 0 : i32
    %c0_i32_0 = arith.constant 0 : i32
    %c0_i32_1 = arith.constant 0 : i32
    return %arg0, %c0_i32, %c0_i32_0 : i32, i32, i32
  }
}

module attributes {stable_mosaic.version = 11 : i64} {
  func.func @_normalize_kernel(%arg0: i32, %arg1: memref<256x128xf32, #tpu.memory_space<vmem>>, %arg2: memref<1x128xf32, #tpu.memory_space<vmem>>, %arg3: memref<1x128xf32, #tpu.memory_space<vmem>>, %arg4: memref<256x128xf32, #tpu.memory_space<vmem>>) attributes {dimension_semantics = [#tpu.dimension_semantics<parallel>], iteration_bounds = array<i64: 2>, scalar_prefetch = 0 : i64, scratch_operands = 0 : i64, tpu.core_type = #tpu.core_type<tc>, window_params = [{transform_indices = @transform_0, window_bounds = array<i64: 256, 128>}, {pipeline_mode = #tpu.pipeline_mode<synchronous>, transform_indices = @transform_1, window_bounds = array<i64: 1, 128>}, {pipeline_mode = #tpu.pipeline_mode<synchronous>, transform_indices = @transform_2, window_bounds = array<i64: 1, 128>}, {transform_indices = @transform_3, window_bounds = array<i64: 256, 128>}]} {
    %c0 = arith.constant 0 : index
    %c0_0 = arith.constant 0 : index
    %0 = vector.load %arg1[%c0, %c0_0] : memref<256x128xf32, #tpu.memory_space<vmem>>, vector<256x128xf32>
    %c0_1 = arith.constant 0 : index
    %c0_2 = arith.constant 0 : index
    %1 = vector.load %arg2[%c0_1, %c0_2] : memref<1x128xf32, #tpu.memory_space<vmem>>, vector<1x128xf32>
    %2 = vector.broadcast %1 : vector<1x128xf32> to vector<256x128xf32>
    %3 = arith.mulf %0, %2 : vector<256x128xf32>
    %c0_3 = arith.constant 0 : index
    %c0_4 = arith.constant 0 : index
    %4 = vector.load %arg3[%c0_3, %c0_4] : memref<1x128xf32, #tpu.memory_space<vmem>>, vector<1x128xf32>
    %5 = vector.broadcast %4 : vector<1x128xf32> to vector<256x128xf32>
    %6 = arith.addf %3, %5 : vector<256x128xf32>
    %c0_5 = arith.constant 0 : index
    %c0_6 = arith.constant 0 : index
    %7 = vector.load %arg4[%c0_5, %c0_6] : memref<256x128xf32, #tpu.memory_space<vmem>>, vector<256x128xf32>
    tpu.vector_store %arg4[%c0_5, %c0_6], %6 {strides = array<i32>} : memref<256x128xf32, #tpu.memory_space<vmem>>, vector<256x128xf32>,
    return
  }
  func.func @transform_0(%arg0: i32) -> (i32, i32) {
    %c0_i32 = arith.constant 0 : i32
    %c0_i32_0 = arith.constant 0 : i32
    return %arg0, %c0_i32 : i32, i32
  }
  func.func @transform_1(%arg0: i32) -> (i32, i32) {
    %c0_i32 = arith.constant 0 : i32
    %c0_i32_0 = arith.constant 0 : i32
    %c0_i32_1 = arith.constant 0 : i32
    return %c0_i32, %c0_i32_0 : i32, i32
  }
  func.func @transform_2(%arg0: i32) -> (i32, i32) {
    %c0_i32 = arith.constant 0 : i32
    %c0_i32_0 = arith.constant 0 : i32
    %c0_i32_1 = arith.constant 0 : i32
    return %c0_i32, %c0_i32_0 : i32, i32
  }
  func.func @transform_3(%arg0: i32) -> (i32, i32) {
    %c0_i32 = arith.constant 0 : i32
    %c0_i32_0 = arith.constant 0 : i32
    return %arg0, %c0_i32 : i32, i32
  }
}

</mosaic_0001>

<llo_original>
// kernel: aspp_block_forward.3
$region0: #{aspp_block_forward.3}
  #allocation0 [shape = 'u32[]', space=smem, size = 0x4, offset = 0x4, fixed_abs, tag = 'smem constant byte address 0x4 - core index']
  #allocation1 [shape = 'u32[72,128]{1,0:T(1,128)}', space=vmem, size = 0x9000, scoped, tag = 'internal scratch']
  %s0 = inlined_call_operand.vmem [shape: f32[512,128], index: 0, kind: input, shape index: {}]
  %s1 = inlined_call_operand.vmem [shape: f32[1,128], index: 1, kind: input, shape index: {}]
  %s2 = inlined_call_operand.vmem [shape: f32[1,128], index: 2, kind: input, shape index: {}]
  %s3 = inlined_call_operand.vmem [shape: f32[512,128], index: 3, kind: output, shape index: {}]
  %s4 = sld [smem:[#allocation0]]
  $region45: #{aspp_block_forward.3} parent=0
    _
  %s6 = ssub.s32 1, %s4
  %s7 = scalar_select 0, %s6, %s4
  loop: start=0, step=1, limit=4
  $region2: #{aspp_block_forward.3} parent=0 // loop_pre_header
    _
  $region3: #{aspp_block_forward.3} parent=0 // loop_header
    %s9 = sphi 0, %s13
    %p10 = scmp.ge.s32.totalorder %s9, 4
    %s19 = sphi 0, %s21
    %s22 = sphi 0, %s19
    %s23 = sphi 0, %s22
    %s39 = sphi 0, %s23
    %s43 = sphi 0, %s43
    %s45 = sphi 0, %s43
    %s46 = sphi 0, %s45
    %s60 = sphi 0, %s46
    %s64 = sphi 0, %s64
    %s66 = sphi 0, %s64
    %s67 = sphi 0, %s66
    %s81 = sphi 0, %s67
    %s87 = sphi 0, %s89
    %s90 = sphi 0, %s87
    %s91 = sphi 0, %s90
    %s107 = sphi 0, %s91
  $region4: #{aspp_block_forward.3} parent=0 // loop_header_branch
    %12 = sbr.rel (%p10) target = $region8
  $region5: #{aspp_block_forward.3} parent=0 // loop_body
    %s14 = ssub.s32 %s9, 1
    %s15 = ssub.s32 %s9, 2
    %s16 = sadd.s32 %s9, 1
    %s17 = ssub.s32 %s9, %s16
    %p18 = scmp.eq.s32.totalorder %s17, 0
    %s20 = sadd.s32 %s19, 1
    %s21 = scalar_select %p18, %s19, %s20
    %p24 = pneg %p18
    %p25 = scmp.eq.s32.totalorder %s9, 1
    %p26 = por %p24, %p25
    %p27 = scmp.ne.s32.totalorder %s19, %s22
    %p28 = scmp.eq.s32.totalorder %s9, 0
    %p29 = por %p27, %p28
    %p30 = scmp.ne.s32.totalorder %s19, %s22
    %p31 = scmp.eq.s32.totalorder %s14, 1
    %p32 = por %p30, %p31
    %p33 = scmp.ne.s32.totalorder %s22, %s23
    %p34 = scmp.eq.s32.totalorder %s14, 0
    %p35 = por %p33, %p34
    %p36 = scmp.ne.s32.totalorder %s22, %s23
    %p37 = scmp.eq.s32.totalorder %s15, 1
    %p38 = por %p36, %p37
    %p40 = scmp.ne.s32.totalorder %s23, %s39
    %p41 = scmp.eq.s32.totalorder %s15, 0
    %p42 = por %p40, %p41
    %s44 = sadd.s32 %s43, 1
    %p47 = scmp.eq.s32.totalorder %s9, 1
    %p48 = scmp.ne.s32.totalorder %s43, %s45
    %p49 = scmp.eq.s32.totalorder %s9, 0
    %p50 = por %p48, %p49
    %p51 = scmp.ne.s32.totalorder %s43, %s45
    %p52 = scmp.eq.s32.totalorder %s14, 1
    %p53 = por %p51, %p52
    %p54 = scmp.ne.s32.totalorder %s45, %s46
    %p55 = scmp.eq.s32.totalorder %s14, 0
    %p56 = por %p54, %p55
    %p57 = scmp.ne.s32.totalorder %s45, %s46
    %p58 = scmp.eq.s32.totalorder %s15, 1
    %p59 = por %p57, %p58
    %p61 = scmp.ne.s32.totalorder %s46, %s60
    %p62 = scmp.eq.s32.totalorder %s15, 0
    %p63 = por %p61, %p62
    %s65 = sadd.s32 %s64, 1
    %p68 = scmp.eq.s32.totalorder %s9, 1
    %p69 = scmp.ne.s32.totalorder %s64, %s66
    %p70 = scmp.eq.s32.totalorder %s9, 0
    %p71 = por %p69, %p70
    %p72 = scmp.ne.s32.totalorder %s64, %s66
    %p73 = scmp.eq.s32.totalorder %s14, 1
    %p74 = por %p72, %p73
    %p75 = scmp.ne.s32.totalorder %s66, %s67
    %p76 = scmp.eq.s32.totalorder %s14, 0
    %p77 = por %p75, %p76
    %p78 = scmp.ne.s32.totalorder %s66, %s67
    %p79 = scmp.eq.s32.totalorder %s15, 1
    %p80 = por %p78, %p79
    %p82 = scmp.ne.s32.totalorder %s67, %s81
    %p83 = scmp.eq.s32.totalorder %s15, 0
    %p84 = por %p82, %p83
    %s85 = ssub.s32 %s9, %s16
    %p86 = scmp.eq.s32.totalorder %s85, 0
    %s88 = sadd.s32 %s87, 1
    %s89 = scalar_select %p86, %s87, %s88
    %p92 = pneg %p86
    %p93 = scmp.eq.s32.totalorder %s9, 1
    %p94 = por %p92, %p93
    %p95 = scmp.ne.s32.totalorder %s87, %s90
    %p96 = scmp.eq.s32.totalorder %s9, 0
    %p97 = por %p95, %p96
    %p98 = scmp.ne.s32.totalorder %s87, %s90
    %p99 = scmp.eq.s32.totalorder %s14, 1
    %p100 = por %p98, %p99
    %p101 = scmp.ne.s32.totalorder %s90, %s91
    %p102 = scmp.eq.s32.totalorder %s14, 0
    %p103 = por %p101, %p102
    %p104 = scmp.ne.s32.totalorder %s90, %s91
    %p105 = scmp.eq.s32.totalorder %s15, 1
    %p106 = por %p104, %p105
    %p108 = scmp.ne.s32.totalorder %s91, %s107
    %p109 = scmp.eq.s32.totalorder %s15, 0
    %p110 = por %p108, %p109
    %p111 = scmp.le.s32.totalorder 1, %s9
    %p112 = scmp.lt.s32.totalorder %s9, 3
    %p113 = pnand %p111, %p112
    %p114 = pneg %p113
    // Predicated region
    $region9: #{aspp_block_forward.3} parent=5 // pred_check
      _
    $region10: #{aspp_block_forward.3} parent=5 // pred_check_branch
      %116 = sbr.rel (%p113) target = $region12
    $region11: #{aspp_block_forward.3} parent=5 // pred_region
      %s117 = ssub.s32 %s9, 1
      // Predicated region
      $region13: #{aspp_block_forward.3} parent=11 // pred_check
        %p118 = pneg %p56
      $region14: #{aspp_block_forward.3} parent=11 // pred_check_branch
        %120 = sbr.rel (%p118) target = $region16
      $region15: #{aspp_block_forward.3} parent=11 // pred_region
        _
      $region16: #{aspp_block_forward.3} parent=11 // pred_fallthru
        _
      // Predicated region
      $region17: #{aspp_block_forward.3} parent=11 // pred_check
        %p121 = pneg %p77
      $region18: #{aspp_block_forward.3} parent=11 // pred_check_branch
        %123 = sbr.rel (%p121) target = $region20
      $region19: #{aspp_block_forward.3} parent=11 // pred_region
        _
      $region20: #{aspp_block_forward.3} parent=11 // pred_fallthru
        _
    $region12: #{aspp_block_forward.3} parent=5 // pred_fallthru
      _
    %p124 = scmp.lt.s32.totalorder %s9, 2
    // Predicated region
    $region21: #{aspp_block_forward.3} parent=5 // pred_check
      %p125 = pneg %p124
    $region22: #{aspp_block_forward.3} parent=5 // pred_check_branch
      %127 = sbr.rel (%p125) target = $region24
    $region23: #{aspp_block_forward.3} parent=5 // pred_region
      // Predicated region
      $region25: #{aspp_block_forward.3} parent=23 // pred_check
        %p128 = pneg %p29
      $region26: #{aspp_block_forward.3} parent=23 // pred_check_branch
        %130 = sbr.rel (%p128) target = $region28
      $region27: #{aspp_block_forward.3} parent=23 // pred_region
        %s131 = smul.u32 32, %s9
        %p132 = scmp.lt.s32.totalorder %s131, 63
        %s133 = scalar_select %p132, %s131, 63
        %s134 = smul.addr %s133, 8
        %s135 = scalar_lea.vmem %s0, %s134
        %s136 = smul.u32 32, %s9
      $region28: #{aspp_block_forward.3} parent=23 // pred_fallthru
        _
    $region24: #{aspp_block_forward.3} parent=5 // pred_fallthru
      _
    %p137 = scmp.le.s32.totalorder 1, %s9
    %p138 = scmp.lt.s32.totalorder %s9, 3
    %p139 = pnand %p137, %p138
    %p140 = pneg %p139
    // Predicated region
    $region29: #{aspp_block_forward.3} parent=5 // pred_check
      _
    $region30: #{aspp_block_forward.3} parent=5 // pred_check_branch
      %142 = sbr.rel (%p139) target = $region32
    $region31: #{aspp_block_forward.3} parent=5 // pred_region
      %s143 = ssub.s32 %s9, 1
      %s144 = smul.u32 32, %s14
      %p145 = scmp.lt.s32.totalorder %s144, 63
      %s146 = scalar_select %p145, %s144, 63
      %s147 = smul.addr %s146, 8
      %s148 = scalar_lea.vmem %s0, %s147
      %p149 = pneg %p35
      %p150 = pneg %p32
      %p151 = pneg %p56
      %p152 = pneg %p53
      %p153 = pneg %p77
      %p154 = pneg %p74
      %p155 = pneg %p103
      %p156 = pneg %p100
      %s157 = smul.u32 32, %s14
      %p158 = scmp.lt.s32.totalorder %s157, 63
      %s159 = scalar_select %p158, %s157, 63
      %s160 = smul.addr %s159, 8
      %s161 = scalar_lea.vmem %s3, %s160
      %s162 = smul.u32 32, %s14
      %p163 = scmp.lt.s32.totalorder %s162, 63
      %s164 = scalar_select %p163, %s162, 63
      %s165 = smul.addr %s164, 8
      %s166 = scalar_lea.vmem %s0, %s165
      %s167 = smul.u32 32, %s14
      %s168 = smul.u32 32, %s14
      %p169 = scmp.lt.s32.totalorder %s168, 63
      %s170 = scalar_select %p169, %s168, 63
      %s171 = smul.addr %s170, 8
      %s172 = scalar_lea.vmem %s3, %s171
      %s173 = smul.u32 32, %s14
      %v174 = vld [vmem:[%s166] sm:$0xff]
      %v175 = vld [vmem:[%s166 + $0x8] sm:$0xff]
      %v176 = vld [vmem:[%s166 + $0x10] sm:$0xff]
      %v177 = vld [vmem:[%s166 + $0x18] sm:$0xff]
      %v178 = vld [vmem:[%s166 + $0x20] sm:$0xff]
      %v179 = vld [vmem:[%s166 + $0x28] sm:$0xff]
      %v180 = vld [vmem:[%s166 + $0x30] sm:$0xff]
      %v181 = vld [vmem:[%s166 + $0x38] sm:$0xff]
      %v182 = vld [vmem:[%s166 + $0x40] sm:$0xff]
      %v183 = vld [vmem:[%s166 + $0x48] sm:$0xff]
      %v184 = vld [vmem:[%s166 + $0x50] sm:$0xff]
      %v185 = vld [vmem:[%s166 + $0x58] sm:$0xff]
      %v186 = vld [vmem:[%s166 + $0x60] sm:$0xff]
      %v187 = vld [vmem:[%s166 + $0x68] sm:$0xff]
      %v188 = vld [vmem:[%s166 + $0x70] sm:$0xff]
      %v189 = vld [vmem:[%s166 + $0x78] sm:$0xff]
      %v190 = vld [vmem:[%s166 + $0x80] sm:$0xff]
      %v191 = vld [vmem:[%s166 + $0x88] sm:$0xff]
      %v192 = vld [vmem:[%s166 + $0x90] sm:$0xff]
      %v193 = vld [vmem:[%s166 + $0x98] sm:$0xff]
      %v194 = vld [vmem:[%s166 + $0xa0] sm:$0xff]
      %v195 = vld [vmem:[%s166 + $0xa8] sm:$0xff]
      %v196 = vld [vmem:[%s166 + $0xb0] sm:$0xff]
      %v197 = vld [vmem:[%s166 + $0xb8] sm:$0xff]
      %v198 = vld [vmem:[%s166 + $0xc0] sm:$0xff]
      %v199 = vld [vmem:[%s166 + $0xc8] sm:$0xff]
      %v200 = vld [vmem:[%s166 + $0xd0] sm:$0xff]
      %v201 = vld [vmem:[%s166 + $0xd8] sm:$0xff]
      %v202 = vld [vmem:[%s166 + $0xe0] sm:$0xff]
      %v203 = vld [vmem:[%s166 + $0xe8] sm:$0xff]
      %v204 = vld [vmem:[%s166 + $0xf0] sm:$0xff]
      %v205 = vld [vmem:[%s166 + $0xf8] sm:$0xff]
      %v206 = vld [vmem:[%s1] sm:$0x1]
      %v208 = vperm.slane %v206, 0
      %v210 = vmul.f32 %v174, %v208
      %v211 = vmul.f32 %v175, %v208
      %v212 = vmul.f32 %v176, %v208
      %v213 = vmul.f32 %v177, %v208
      %v214 = vmul.f32 %v178, %v208
      %v215 = vmul.f32 %v179, %v208
      %v216 = vmul.f32 %v180, %v208
      %v217 = vmul.f32 %v181, %v208
      %v218 = vmul.f32 %v182, %v208
      %v219 = vmul.f32 %v183, %v208
      %v220 = vmul.f32 %v184, %v208
      %v221 = vmul.f32 %v185, %v208
      %v222 = vmul.f32 %v186, %v208
      %v223 = vmul.f32 %v187, %v208
      %v224 = vmul.f32 %v188, %v208
      %v225 = vmul.f32 %v189, %v208
      %v226 = vmul.f32 %v190, %v208
      %v227 = vmul.f32 %v191, %v208
      %v228 = vmul.f32 %v192, %v208
      %v229 = vmul.f32 %v193, %v208
      %v230 = vmul.f32 %v194, %v208
      %v231 = vmul.f32 %v195, %v208
      %v232 = vmul.f32 %v196, %v208
      %v233 = vmul.f32 %v197, %v208
      %v234 = vmul.f32 %v198, %v208
      %v235 = vmul.f32 %v199, %v208
      %v236 = vmul.f32 %v200, %v208
      %v237 = vmul.f32 %v201, %v208
      %v238 = vmul.f32 %v202, %v208
      %v239 = vmul.f32 %v203, %v208
      %v240 = vmul.f32 %v204, %v208
      %v241 = vmul.f32 %v205, %v208
      %v242 = vld [vmem:[%s2] sm:$0x1]
      %v244 = vperm.slane %v242, 0
      %v246 = vadd.f32 %v210, %v244
      %v247 = vadd.f32 %v211, %v244
      %v248 = vadd.f32 %v212, %v244
      %v249 = vadd.f32 %v213, %v244
      %v250 = vadd.f32 %v214, %v244
      %v251 = vadd.f32 %v215, %v244
      %v252 = vadd.f32 %v216, %v244
      %v253 = vadd.f32 %v217, %v244
      %v254 = vadd.f32 %v218, %v244
      %v255 = vadd.f32 %v219, %v244
      %v256 = vadd.f32 %v220, %v244
      %v257 = vadd.f32 %v221, %v244
      %v258 = vadd.f32 %v222, %v244
      %v259 = vadd.f32 %v223, %v244
      %v260 = vadd.f32 %v224, %v244
      %v261 = vadd.f32 %v225, %v244
      %v262 = vadd.f32 %v226, %v244
      %v263 = vadd.f32 %v227, %v244
      %v264 = vadd.f32 %v228, %v244
      %v265 = vadd.f32 %v229, %v244
      %v266 = vadd.f32 %v230, %v244
      %v267 = vadd.f32 %v231, %v244
      %v268 = vadd.f32 %v232, %v244
      %v269 = vadd.f32 %v233, %v244
      %v270 = vadd.f32 %v234, %v244
      %v271 = vadd.f32 %v235, %v244
      %v272 = vadd.f32 %v236, %v244
      %v273 = vadd.f32 %v237, %v244
      %v274 = vadd.f32 %v238, %v244
      %v275 = vadd.f32 %v239, %v244
      %v276 = vadd.f32 %v240, %v244
      %v277 = vadd.f32 %v241, %v244
      %278 = vst [vmem:[%s172] sm:$0xff] %v246
      %279 = vst [vmem:[%s172 + $0x8] sm:$0xff] %v247
      %280 = vst [vmem:[%s172 + $0x10] sm:$0xff] %v248
      %281 = vst [vmem:[%s172 + $0x18] sm:$0xff] %v249
      %282 = vst [vmem:[%s172 + $0x20] sm:$0xff] %v250
      %283 = vst [vmem:[%s172 + $0x28] sm:$0xff] %v251
      %284 = vst [vmem:[%s172 + $0x30] sm:$0xff] %v252
      %285 = vst [vmem:[%s172 + $0x38] sm:$0xff] %v253
      %286 = vst [vmem:[%s172 + $0x40] sm:$0xff] %v254
      %287 = vst [vmem:[%s172 + $0x48] sm:$0xff] %v255
      %288 = vst [vmem:[%s172 + $0x50] sm:$0xff] %v256
      %289 = vst [vmem:[%s172 + $0x58] sm:$0xff] %v257
      %290 = vst [vmem:[%s172 + $0x60] sm:$0xff] %v258
      %291 = vst [vmem:[%s172 + $0x68] sm:$0xff] %v259
      %292 = vst [vmem:[%s172 + $0x70] sm:$0xff] %v260
      %293 = vst [vmem:[%s172 + $0x78] sm:$0xff] %v261
      %294 = vst [vmem:[%s172 + $0x80] sm:$0xff] %v262
      %295 = vst [vmem:[%s172 + $0x88] sm:$0xff] %v263
      %296 = vst [vmem:[%s172 + $0x90] sm:$0xff] %v264
      %297 = vst [vmem:[%s172 + $0x98] sm:$0xff] %v265
      %298 = vst [vmem:[%s172 + $0xa0] sm:$0xff] %v266
      %299 = vst [vmem:[%s172 + $0xa8] sm:$0xff] %v267
      %300 = vst [vmem:[%s172 + $0xb0] sm:$0xff] %v268
      %301 = vst [vmem:[%s172 + $0xb8] sm:$0xff] %v269
      %302 = vst [vmem:[%s172 + $0xc0] sm:$0xff] %v270
      %303 = vst [vmem:[%s172 + $0xc8] sm:$0xff] %v271
      %304 = vst [vmem:[%s172 + $0xd0] sm:$0xff] %v272
      %305 = vst [vmem:[%s172 + $0xd8] sm:$0xff] %v273
      %306 = vst [vmem:[%s172 + $0xe0] sm:$0xff] %v274
      %307 = vst [vmem:[%s172 + $0xe8] sm:$0xff] %v275
      %308 = vst [vmem:[%s172 + $0xf0] sm:$0xff] %v276
      %309 = vst [vmem:[%s172 + $0xf8] sm:$0xff] %v277
      %s310 = smul.u32 32, %s14
      %p311 = scmp.lt.s32.totalorder %s310, 63
      %s312 = scalar_select %p311, %s310, 63
      %s313 = smul.addr %s312, 8
      %s314 = scalar_lea.vmem %s3, %s313
      // Predicated region
      $region33: #{aspp_block_forward.3} parent=31 // pred_check
        %p315 = pneg %p100
      $region34: #{aspp_block_forward.3} parent=31 // pred_check_branch
        %317 = sbr.rel (%p315) target = $region36
      $region35: #{aspp_block_forward.3} parent=31 // pred_region
        %s318 = smul.u32 32, %s14
      $region36: #{aspp_block_forward.3} parent=31 // pred_fallthru
        _
    $region32: #{aspp_block_forward.3} parent=5 // pred_fallthru
      _
    %p319 = scmp.le.s32.totalorder 2, %s9
    // Predicated region
    $region37: #{aspp_block_forward.3} parent=5 // pred_check
      %p320 = pneg %p319
    $region38: #{aspp_block_forward.3} parent=5 // pred_check_branch
      %322 = sbr.rel (%p320) target = $region40
    $region39: #{aspp_block_forward.3} parent=5 // pred_region
      %s323 = ssub.s32 %s9, 2
      // Predicated region
      $region41: #{aspp_block_forward.3} parent=39 // pred_check
        %p324 = pneg %p106
      $region42: #{aspp_block_forward.3} parent=39 // pred_check_branch
        %326 = sbr.rel (%p324) target = $region44
      $region43: #{aspp_block_forward.3} parent=39 // pred_region
        %s327 = smul.u32 32, %s15
        %p328 = scmp.lt.s32.totalorder %s327, 63
        %s329 = scalar_select %p328, %s327, 63
        %s330 = smul.addr %s329, 8
        %s331 = scalar_lea.vmem %s3, %s330
      $region44: #{aspp_block_forward.3} parent=39 // pred_fallthru
        _
    $region40: #{aspp_block_forward.3} parent=5 // pred_fallthru
      _
  $region6: #{aspp_block_forward.3} parent=0 // loop_footer
    %s13 = sadd.s32 1, %s9
  $region7: #{aspp_block_forward.3} parent=0 // loop_footer_branch
    %8 = sbr.rel target = $region3
  $region8: #{aspp_block_forward.3} parent=0 // loop_exit
    _

// kernel: aspp_block_forward.2
$region0: #{aspp_block_forward.2}
  #allocation0 [shape = 'u32[]', space=smem, size = 0x4, offset = 0x4, fixed_abs, tag = 'smem constant byte address 0x4 - core index']
  #allocation1 [shape = 'u32[72,128]{1,0:T(1,128)}', space=vmem, size = 0x9000, scoped, tag = 'internal scratch']
  %s0 = inlined_call_operand.vmem [shape: f32[512,128], index: 0, kind: input, shape index: {}]
  %s1 = inlined_call_operand.vmem [shape: f32[128,128], index: 1, kind: input, shape index: {}]
  %s2 = inlined_call_operand.vmem [shape: f32[1,128], index: 2, kind: input, shape index: {}]
  %s3 = inlined_call_operand.vmem [shape: f32[512,128], index: 3, kind: output, shape index: {0}]
  %s4 = inlined_call_operand.vmem [shape: f32[2,8,128], index: 4, kind: output, shape index: {1}]
  %5 = xla_tuple %s3, %s4
  %s6 = sld [smem:[#allocation0]]
  $region53: #{aspp_block_forward.2} parent=0
    _
  %s8 = ssub.s32 1, %s6
  %s9 = scalar_select 0, %s8, %s6
  loop: start=0, step=1, limit=4
  $region2: #{aspp_block_forward.2} parent=0 // loop_pre_header
    _
  $region3: #{aspp_block_forward.2} parent=0 // loop_header
    %s11 = sphi 0, %s15
    %p12 = scmp.ge.s32.totalorder %s11, 4
    %s21 = sphi 0, %s23
    %s24 = sphi 0, %s21
    %s25 = sphi 0, %s24
    %s41 = sphi 0, %s25
    %s45 = sphi 0, %s45
    %s47 = sphi 0, %s45
    %s48 = sphi 0, %s47
    %s62 = sphi 0, %s48
    %s66 = sphi 0, %s66
    %s68 = sphi 0, %s66
    %s69 = sphi 0, %s68
    %s83 = sphi 0, %s69
    %s89 = sphi 0, %s91
    %s92 = sphi 0, %s89
    %s93 = sphi 0, %s92
    %s109 = sphi 0, %s93
    %s115 = sphi 0, %s117
    %s118 = sphi 0, %s115
    %s119 = sphi 0, %s118
    %s135 = sphi 0, %s119
  $region4: #{aspp_block_forward.2} parent=0 // loop_header_branch
    %14 = sbr.rel (%p12) target = $region8
  $region5: #{aspp_block_forward.2} parent=0 // loop_body
    %s16 = ssub.s32 %s11, 1
    %s17 = ssub.s32 %s11, 2
    %s18 = sadd.s32 %s11, 1
    %s19 = ssub.s32 %s11, %s18
    %p20 = scmp.eq.s32.totalorder %s19, 0
    %s22 = sadd.s32 %s21, 1
    %s23 = scalar_select %p20, %s21, %s22
    %p26 = pneg %p20
    %p27 = scmp.eq.s32.totalorder %s11, 1
    %p28 = por %p26, %p27
    %p29 = scmp.ne.s32.totalorder %s21, %s24
    %p30 = scmp.eq.s32.totalorder %s11, 0
    %p31 = por %p29, %p30
    %p32 = scmp.ne.s32.totalorder %s21, %s24
    %p33 = scmp.eq.s32.totalorder %s16, 1
    %p34 = por %p32, %p33
    %p35 = scmp.ne.s32.totalorder %s24, %s25
    %p36 = scmp.eq.s32.totalorder %s16, 0
    %p37 = por %p35, %p36
    %p38 = scmp.ne.s32.totalorder %s24, %s25
    %p39 = scmp.eq.s32.totalorder %s17, 1
    %p40 = por %p38, %p39
    %p42 = scmp.ne.s32.totalorder %s25, %s41
    %p43 = scmp.eq.s32.totalorder %s17, 0
    %p44 = por %p42, %p43
    %s46 = sadd.s32 %s45, 1
    %p49 = scmp.eq.s32.totalorder %s11, 1
    %p50 = scmp.ne.s32.totalorder %s45, %s47
    %p51 = scmp.eq.s32.totalorder %s11, 0
    %p52 = por %p50, %p51
    %p53 = scmp.ne.s32.totalorder %s45, %s47
    %p54 = scmp.eq.s32.totalorder %s16, 1
    %p55 = por %p53, %p54
    %p56 = scmp.ne.s32.totalorder %s47, %s48
    %p57 = scmp.eq.s32.totalorder %s16, 0
    %p58 = por %p56, %p57
    %p59 = scmp.ne.s32.totalorder %s47, %s48
    %p60 = scmp.eq.s32.totalorder %s17, 1
    %p61 = por %p59, %p60
    %p63 = scmp.ne.s32.totalorder %s48, %s62
    %p64 = scmp.eq.s32.totalorder %s17, 0
    %p65 = por %p63, %p64
    %s67 = sadd.s32 %s66, 1
    %p70 = scmp.eq.s32.totalorder %s11, 1
    %p71 = scmp.ne.s32.totalorder %s66, %s68
    %p72 = scmp.eq.s32.totalorder %s11, 0
    %p73 = por %p71, %p72
    %p74 = scmp.ne.s32.totalorder %s66, %s68
    %p75 = scmp.eq.s32.totalorder %s16, 1
    %p76 = por %p74, %p75
    %p77 = scmp.ne.s32.totalorder %s68, %s69
    %p78 = scmp.eq.s32.totalorder %s16, 0
    %p79 = por %p77, %p78
    %p80 = scmp.ne.s32.totalorder %s68, %s69
    %p81 = scmp.eq.s32.totalorder %s17, 1
    %p82 = por %p80, %p81
    %p84 = scmp.ne.s32.totalorder %s69, %s83
    %p85 = scmp.eq.s32.totalorder %s17, 0
    %p86 = por %p84, %p85
    %s87 = ssub.s32 %s11, %s18
    %p88 = scmp.eq.s32.totalorder %s87, 0
    %s90 = sadd.s32 %s89, 1
    %s91 = scalar_select %p88, %s89, %s90
    %p94 = pneg %p88
    %p95 = scmp.eq.s32.totalorder %s11, 1
    %p96 = por %p94, %p95
    %p97 = scmp.ne.s32.totalorder %s89, %s92
    %p98 = scmp.eq.s32.totalorder %s11, 0
    %p99 = por %p97, %p98
    %p100 = scmp.ne.s32.totalorder %s89, %s92
    %p101 = scmp.eq.s32.totalorder %s16, 1
    %p102 = por %p100, %p101
    %p103 = scmp.ne.s32.totalorder %s92, %s93
    %p104 = scmp.eq.s32.totalorder %s16, 0
    %p105 = por %p103, %p104
    %p106 = scmp.ne.s32.totalorder %s92, %s93
    %p107 = scmp.eq.s32.totalorder %s17, 1
    %p108 = por %p106, %p107
    %p110 = scmp.ne.s32.totalorder %s93, %s109
    %p111 = scmp.eq.s32.totalorder %s17, 0
    %p112 = por %p110, %p111
    %s113 = ssub.s32 %s11, %s18
    %p114 = scmp.eq.s32.totalorder %s113, 0
    %s116 = sadd.s32 %s115, 1
    %s117 = scalar_select %p114, %s115, %s116
    %p120 = pneg %p114
    %p121 = scmp.eq.s32.totalorder %s11, 1
    %p122 = por %p120, %p121
    %p123 = scmp.ne.s32.totalorder %s115, %s118
    %p124 = scmp.eq.s32.totalorder %s11, 0
    %p125 = por %p123, %p124
    %p126 = scmp.ne.s32.totalorder %s115, %s118
    %p127 = scmp.eq.s32.totalorder %s16, 1
    %p128 = por %p126, %p127
    %p129 = scmp.ne.s32.totalorder %s118, %s119
    %p130 = scmp.eq.s32.totalorder %s16, 0
    %p131 = por %p129, %p130
    %p132 = scmp.ne.s32.totalorder %s118, %s119
    %p133 = scmp.eq.s32.totalorder %s17, 1
    %p134 = por %p132, %p133
    %p136 = scmp.ne.s32.totalorder %s119, %s135
    %p137 = scmp.eq.s32.totalorder %s17, 0
    %p138 = por %p136, %p137
    %p139 = scmp.le.s32.totalorder 1, %s11
    %p140 = scmp.lt.s32.totalorder %s11, 3
    %p141 = pnand %p139, %p140
    %p142 = pneg %p141
    // Predicated region
    $region9: #{aspp_block_forward.2} parent=5 // pred_check
      _
    $region10: #{aspp_block_forward.2} parent=5 // pred_check_branch
      %144 = sbr.rel (%p141) target = $region12
    $region11: #{aspp_block_forward.2} parent=5 // pred_region
      %s145 = ssub.s32 %s11, 1
      // Predicated region
      $region13: #{aspp_block_forward.2} parent=11 // pred_check
        %p146 = pneg %p58
      $region14: #{aspp_block_forward.2} parent=11 // pred_check_branch
        %148 = sbr.rel (%p146) target = $region16
      $region15: #{aspp_block_forward.2} parent=11 // pred_region
        _
      $region16: #{aspp_block_forward.2} parent=11 // pred_fallthru
        _
      // Predicated region
      $region17: #{aspp_block_forward.2} parent=11 // pred_check
        %p149 = pneg %p79
      $region18: #{aspp_block_forward.2} parent=11 // pred_check_branch
        %151 = sbr.rel (%p149) target = $region20
      $region19: #{aspp_block_forward.2} parent=11 // pred_region
        _
      $region20: #{aspp_block_forward.2} parent=11 // pred_fallthru
        _
    $region12: #{aspp_block_forward.2} parent=5 // pred_fallthru
      _
    %p152 = scmp.lt.s32.totalorder %s11, 2
    // Predicated region
    $region21: #{aspp_block_forward.2} parent=5 // pred_check
      %p153 = pneg %p152
    $region22: #{aspp_block_forward.2} parent=5 // pred_check_branch
      %155 = sbr.rel (%p153) target = $region24
    $region23: #{aspp_block_forward.2} parent=5 // pred_region
      // Predicated region
      $region25: #{aspp_block_forward.2} parent=23 // pred_check
        %p156 = pneg %p31
      $region26: #{aspp_block_forward.2} parent=23 // pred_check_branch
        %158 = sbr.rel (%p156) target = $region28
      $region27: #{aspp_block_forward.2} parent=23 // pred_region
        %s159 = smul.u32 32, %s11
        %p160 = scmp.lt.s32.totalorder %s159, 63
        %s161 = scalar_select %p160, %s159, 63
        %s162 = smul.addr %s161, 8
        %s163 = scalar_lea.vmem %s0, %s162
        %s164 = smul.u32 32, %s11
      $region28: #{aspp_block_forward.2} parent=23 // pred_fallthru
        _
    $region24: #{aspp_block_forward.2} parent=5 // pred_fallthru
      _
    %p165 = scmp.le.s32.totalorder 1, %s11
    %p166 = scmp.lt.s32.totalorder %s11, 3
    %p167 = pnand %p165, %p166
    %p168 = pneg %p167
    // Predicated region
    $region29: #{aspp_block_forward.2} parent=5 // pred_check
      _
    $region30: #{aspp_block_forward.2} parent=5 // pred_check_branch
      %170 = sbr.rel (%p167) target = $region32
    $region31: #{aspp_block_forward.2} parent=5 // pred_region
      %s171 = ssub.s32 %s11, 1
      %s172 = smul.u32 32, %s16
      %p173 = scmp.lt.s32.totalorder %s172, 63
      %s174 = scalar_select %p173, %s172, 63
      %s175 = smul.addr %s174, 8
      %s176 = scalar_lea.vmem %s0, %s175
      %p177 = pneg %p37
      %p178 = pneg %p34
      %p179 = pneg %p58
      %p180 = pneg %p55
      %p181 = pneg %p79
      %p182 = pneg %p76
      %p183 = pneg %p105
      %p184 = pneg %p102
      %s185 = smul.u32 32, %s16
      %p186 = scmp.lt.s32.totalorder %s185, 63
      %s187 = scalar_select %p186, %s185, 63
      %s188 = smul.addr %s187, 8
      %s189 = scalar_lea.vmem %s3, %s188
      %p190 = pneg %p131
      %p191 = pneg %p128
      %p192 = scmp.lt.s32.totalorder %s16, 1
      %s193 = scalar_select %p192, %s16, 1
      %s194 = smul.addr %s193, 8
      %s195 = scalar_lea.vmem %s4, %s194
      %s196 = smul.u32 32, %s16
      %p197 = scmp.lt.s32.totalorder %s196, 63
      %s198 = scalar_select %p197, %s196, 63
      %s199 = smul.addr %s198, 8
      %s200 = scalar_lea.vmem %s0, %s199
      %s201 = smul.u32 32, %s16
      %s202 = smul.u32 32, %s16
      %p203 = scmp.lt.s32.totalorder %s202, 63
      %s204 = scalar_select %p203, %s202, 63
      %s205 = smul.addr %s204, 8
      %s206 = scalar_lea.vmem %s3, %s205
      %s207 = smul.u32 32, %s16
      %p208 = scmp.lt.s32.totalorder %s16, 1
      %s209 = scalar_select %p208, %s16, 1
      %s210 = smul.addr %s209, 8
      %s211 = scalar_lea.vmem %s4, %s210
      %v212 = vld [vmem:[%s200] sm:$0xff]
      %v213 = vld [vmem:[%s200 + $0x8] sm:$0xff]
      %v214 = vld [vmem:[%s200 + $0x10] sm:$0xff]
      %v215 = vld [vmem:[%s200 + $0x18] sm:$0xff]
      %v216 = vld [vmem:[%s200 + $0x20] sm:$0xff]
      %v217 = vld [vmem:[%s200 + $0x28] sm:$0xff]
      %v218 = vld [vmem:[%s200 + $0x30] sm:$0xff]
      %v219 = vld [vmem:[%s200 + $0x38] sm:$0xff]
      %v220 = vld [vmem:[%s200 + $0x40] sm:$0xff]
      %v221 = vld [vmem:[%s200 + $0x48] sm:$0xff]
      %v222 = vld [vmem:[%s200 + $0x50] sm:$0xff]
      %v223 = vld [vmem:[%s200 + $0x58] sm:$0xff]
      %v224 = vld [vmem:[%s200 + $0x60] sm:$0xff]
      %v225 = vld [vmem:[%s200 + $0x68] sm:$0xff]
      %v226 = vld [vmem:[%s200 + $0x70] sm:$0xff]
      %v227 = vld [vmem:[%s200 + $0x78] sm:$0xff]
      %v228 = vld [vmem:[%s200 + $0x80] sm:$0xff]
      %v229 = vld [vmem:[%s200 + $0x88] sm:$0xff]
      %v230 = vld [vmem:[%s200 + $0x90] sm:$0xff]
      %v231 = vld [vmem:[%s200 + $0x98] sm:$0xff]
      %v232 = vld [vmem:[%s200 + $0xa0] sm:$0xff]
      %v233 = vld [vmem:[%s200 + $0xa8] sm:$0xff]
      %v234 = vld [vmem:[%s200 + $0xb0] sm:$0xff]
      %v235 = vld [vmem:[%s200 + $0xb8] sm:$0xff]
      %v236 = vld [vmem:[%s200 + $0xc0] sm:$0xff]
      %v237 = vld [vmem:[%s200 + $0xc8] sm:$0xff]
      %v238 = vld [vmem:[%s200 + $0xd0] sm:$0xff]
      %v239 = vld [vmem:[%s200 + $0xd8] sm:$0xff]
      %v240 = vld [vmem:[%s200 + $0xe0] sm:$0xff]
      %v241 = vld [vmem:[%s200 + $0xe8] sm:$0xff]
      %v242 = vld [vmem:[%s200 + $0xf0] sm:$0xff]
      %v243 = vld [vmem:[%s200 + $0xf8] sm:$0xff]
      %v244 = vld [vmem:[%s1] sm:$0xff]
      %v245 = vld [vmem:[%s1 + $0x8] sm:$0xff]
      %v246 = vld [vmem:[%s1 + $0x10] sm:$0xff]
      %v247 = vld [vmem:[%s1 + $0x18] sm:$0xff]
      %v248 = vld [vmem:[%s1 + $0x20] sm:$0xff]
      %v249 = vld [vmem:[%s1 + $0x28] sm:$0xff]
      %v250 = vld [vmem:[%s1 + $0x30] sm:$0xff]
      %v251 = vld [vmem:[%s1 + $0x38] sm:$0xff]
      %v252 = vld [vmem:[%s1 + $0x40] sm:$0xff]
      %v253 = vld [vmem:[%s1 + $0x48] sm:$0xff]
      %v254 = vld [vmem:[%s1 + $0x50] sm:$0xff]
      %v255 = vld [vmem:[%s1 + $0x58] sm:$0xff]
      %v256 = vld [vmem:[%s1 + $0x60] sm:$0xff]
      %v257 = vld [vmem:[%s1 + $0x68] sm:$0xff]
      %v258 = vld [vmem:[%s1 + $0x70] sm:$0xff]
      %v259 = vld [vmem:[%s1 + $0x78] sm:$0xff]
      %v260 = vld [vmem:[%s2] sm:$0x1]
      %v262 = vperm.slane %v260, 0
      %264 = vmatpush.msra.mxu0 %v259
      %265 = vmatpush.msra.mxu0 %v258
      %266 = vmatpush.msra.mxu0 %v257
      %267 = vmatpush.msra.mxu0 %v256
      %268 = vmatpush.msra.mxu0 %v255
      %269 = vmatpush.msra.mxu0 %v254
      %270 = vmatpush.msra.mxu0 %v253
      %271 = vmatpush.msra.mxu0 %v252
      %272 = vmatpush.msra.mxu0 %v251
      %273 = vmatpush.msra.mxu0 %v250
      %274 = vmatpush.msra.mxu0 %v249
      %275 = vmatpush.msra.mxu0 %v248
      %276 = vmatpush.msra.mxu0 %v247
      %277 = vmatpush.msra.mxu0 %v246
      %278 = vmatpush.msra.mxu0 %v245
      %279 = vmatpush.msra.mxu0 %v244
      %280 = vmatmul.f32.gmra.mxu0 %v212
      %v281 = vpop.f32.mrf.mxu0
      %v282 = vadd.f32 %v262, %v281
      %283 = vmatmul.f32.gmra.mxu0 %v213
      %v284 = vpop.f32.mrf.mxu0
      %v285 = vadd.f32 %v262, %v284
      %286 = vmatmul.f32.gmra.mxu0 %v214
      %v287 = vpop.f32.mrf.mxu0
      %v288 = vadd.f32 %v262, %v287
      %289 = vmatmul.f32.gmra.mxu0 %v215
      %v290 = vpop.f32.mrf.mxu0
      %v291 = vadd.f32 %v262, %v290
      %292 = vmatmul.f32.gmra.mxu0 %v216
      %v293 = vpop.f32.mrf.mxu0
      %v294 = vadd.f32 %v262, %v293
      %295 = vmatmul.f32.gmra.mxu0 %v217
      %v296 = vpop.f32.mrf.mxu0
      %v297 = vadd.f32 %v262, %v296
      %298 = vmatmul.f32.gmra.mxu0 %v218
      %v299 = vpop.f32.mrf.mxu0
      %v300 = vadd.f32 %v262, %v299
      %301 = vmatmul.f32.gmra.mxu0 %v219
      %v302 = vpop.f32.mrf.mxu0
      %v303 = vadd.f32 %v262, %v302
      %304 = vmatmul.f32.gmra.mxu0 %v220
      %v305 = vpop.f32.mrf.mxu0
      %v306 = vadd.f32 %v262, %v305
      %307 = vmatmul.f32.gmra.mxu0 %v221
      %v308 = vpop.f32.mrf.mxu0
      %v309 = vadd.f32 %v262, %v308
      %310 = vmatmul.f32.gmra.mxu0 %v222
      %v311 = vpop.f32.mrf.mxu0
      %v312 = vadd.f32 %v262, %v311
      %313 = vmatmul.f32.gmra.mxu0 %v223
      %v314 = vpop.f32.mrf.mxu0
      %v315 = vadd.f32 %v262, %v314
      %316 = vmatmul.f32.gmra.mxu0 %v224
      %v317 = vpop.f32.mrf.mxu0
      %v318 = vadd.f32 %v262, %v317
      %319 = vmatmul.f32.gmra.mxu0 %v225
      %v320 = vpop.f32.mrf.mxu0
      %v321 = vadd.f32 %v262, %v320
      %322 = vmatmul.f32.gmra.mxu0 %v226
      %v323 = vpop.f32.mrf.mxu0
      %v324 = vadd.f32 %v262, %v323
      %325 = vmatmul.f32.gmra.mxu0 %v227
      %v326 = vpop.f32.mrf.mxu0
      %v327 = vadd.f32 %v262, %v326
      %328 = vmatmul.f32.gmra.mxu0 %v228
      %v329 = vpop.f32.mrf.mxu0
      %v330 = vadd.f32 %v262, %v329
      %331 = vmatmul.f32.gmra.mxu0 %v229
      %v332 = vpop.f32.mrf.mxu0
      %v333 = vadd.f32 %v262, %v332
      %334 = vmatmul.f32.gmra.mxu0 %v230
      %v335 = vpop.f32.mrf.mxu0
      %v336 = vadd.f32 %v262, %v335
      %337 = vmatmul.f32.gmra.mxu0 %v231
      %v338 = vpop.f32.mrf.mxu0
      %v339 = vadd.f32 %v262, %v338
      %340 = vmatmul.f32.gmra.mxu0 %v232
      %v341 = vpop.f32.mrf.mxu0
      %v342 = vadd.f32 %v262, %v341
      %343 = vmatmul.f32.gmra.mxu0 %v233
      %v344 = vpop.f32.mrf.mxu0
      %v345 = vadd.f32 %v262, %v344
      %346 = vmatmul.f32.gmra.mxu0 %v234
      %v347 = vpop.f32.mrf.mxu0
      %v348 = vadd.f32 %v262, %v347
      %349 = vmatmul.f32.gmra.mxu0 %v235
      %v350 = vpop.f32.mrf.mxu0
      %v351 = vadd.f32 %v262, %v350
      %352 = vmatmul.f32.gmra.mxu0 %v236
      %v353 = vpop.f32.mrf.mxu0
      %v354 = vadd.f32 %v262, %v353
      %355 = vmatmul.f32.gmra.mxu0 %v237
      %v356 = vpop.f32.mrf.mxu0
      %v357 = vadd.f32 %v262, %v356
      %358 = vmatmul.f32.gmra.mxu0 %v238
      %v359 = vpop.f32.mrf.mxu0
      %v360 = vadd.f32 %v262, %v359
      %361 = vmatmul.f32.gmra.mxu0 %v239
      %v362 = vpop.f32.mrf.mxu0
      %v363 = vadd.f32 %v262, %v362
      %364 = vmatmul.f32.gmra.mxu0 %v240
      %v365 = vpop.f32.mrf.mxu0
      %v366 = vadd.f32 %v262, %v365
      %367 = vmatmul.f32.gmra.mxu0 %v241
      %v368 = vpop.f32.mrf.mxu0
      %v369 = vadd.f32 %v262, %v368
      %370 = vmatmul.f32.gmra.mxu0 %v242
      %v371 = vpop.f32.mrf.mxu0
      %v372 = vadd.f32 %v262, %v371
      %373 = vmatmul.f32.gmra.mxu0 %v243
      %v374 = vpop.f32.mrf.mxu0
      %v375 = vadd.f32 %v262, %v374
      %376 = vdwg.mxu0
      %v377 = vmax.f32 %v282, 0.0
      %v378 = vmax.f32 %v285, 0.0
      %v379 = vmax.f32 %v288, 0.0
      %v380 = vmax.f32 %v291, 0.0
      %v381 = vmax.f32 %v294, 0.0
      %v382 = vmax.f32 %v297, 0.0
      %v383 = vmax.f32 %v300, 0.0
      %v384 = vmax.f32 %v303, 0.0
      %v385 = vmax.f32 %v306, 0.0
      %v386 = vmax.f32 %v309, 0.0
      %v387 = vmax.f32 %v312, 0.0
      %v388 = vmax.f32 %v315, 0.0
      %v389 = vmax.f32 %v318, 0.0
      %v390 = vmax.f32 %v321, 0.0
      %v391 = vmax.f32 %v324, 0.0
      %v392 = vmax.f32 %v327, 0.0
      %v393 = vmax.f32 %v330, 0.0
      %v394 = vmax.f32 %v333, 0.0
      %v395 = vmax.f32 %v336, 0.0
      %v396 = vmax.f32 %v339, 0.0
      %v397 = vmax.f32 %v342, 0.0
      %v398 = vmax.f32 %v345, 0.0
      %v399 = vmax.f32 %v348, 0.0
      %v400 = vmax.f32 %v351, 0.0
      %v401 = vmax.f32 %v354, 0.0
      %v402 = vmax.f32 %v357, 0.0
      %v403 = vmax.f32 %v360, 0.0
      %v404 = vmax.f32 %v363, 0.0
      %v405 = vmax.f32 %v366, 0.0
      %v406 = vmax.f32 %v369, 0.0
      %v407 = vmax.f32 %v372, 0.0
      %v408 = vmax.f32 %v375, 0.0
      %409 = vst [vmem:[%s206] sm:$0xff] %v377
      %410 = vst [vmem:[%s206 + $0x8] sm:$0xff] %v378
      %411 = vst [vmem:[%s206 + $0x10] sm:$0xff] %v379
      %412 = vst [vmem:[%s206 + $0x18] sm:$0xff] %v380
      %413 = vst [vmem:[%s206 + $0x20] sm:$0xff] %v381
      %414 = vst [vmem:[%s206 + $0x28] sm:$0xff] %v382
      %415 = vst [vmem:[%s206 + $0x30] sm:$0xff] %v383
      %416 = vst [vmem:[%s206 + $0x38] sm:$0xff] %v384
      %417 = vst [vmem:[%s206 + $0x40] sm:$0xff] %v385
      %418 = vst [vmem:[%s206 + $0x48] sm:$0xff] %v386
      %419 = vst [vmem:[%s206 + $0x50] sm:$0xff] %v387
      %420 = vst [vmem:[%s206 + $0x58] sm:$0xff] %v388
      %421 = vst [vmem:[%s206 + $0x60] sm:$0xff] %v389
      %422 = vst [vmem:[%s206 + $0x68] sm:$0xff] %v390
      %423 = vst [vmem:[%s206 + $0x70] sm:$0xff] %v391
      %424 = vst [vmem:[%s206 + $0x78] sm:$0xff] %v392
      %425 = vst [vmem:[%s206 + $0x80] sm:$0xff] %v393
      %426 = vst [vmem:[%s206 + $0x88] sm:$0xff] %v394
      %427 = vst [vmem:[%s206 + $0x90] sm:$0xff] %v395
      %428 = vst [vmem:[%s206 + $0x98] sm:$0xff] %v396
      %429 = vst [vmem:[%s206 + $0xa0] sm:$0xff] %v397
      %430 = vst [vmem:[%s206 + $0xa8] sm:$0xff] %v398
      %431 = vst [vmem:[%s206 + $0xb0] sm:$0xff] %v399
      %432 = vst [vmem:[%s206 + $0xb8] sm:$0xff] %v400
      %433 = vst [vmem:[%s206 + $0xc0] sm:$0xff] %v401
      %434 = vst [vmem:[%s206 + $0xc8] sm:$0xff] %v402
      %435 = vst [vmem:[%s206 + $0xd0] sm:$0xff] %v403
      %436 = vst [vmem:[%s206 + $0xd8] sm:$0xff] %v404
      %437 = vst [vmem:[%s206 + $0xe0] sm:$0xff] %v405
      %438 = vst [vmem:[%s206 + $0xe8] sm:$0xff] %v406
      %439 = vst [vmem:[%s206 + $0xf0] sm:$0xff] %v407
      %440 = vst [vmem:[%s206 + $0xf8] sm:$0xff] %v408
      %v441 = vlaneseq
      %v442 = vshrl.u32 %v441, 7
      %v443 = vadd.s32 %v442, 8
      %v444 = vadd.s32 %v442, 16
      %v445 = vadd.s32 %v442, 24
      %v446 = vadd.s32 %v442, 32
      %v447 = vadd.s32 %v442, 40
      %v448 = vadd.s32 %v442, 48
      %v449 = vadd.s32 %v442, 56
      %v450 = vadd.s32 %v442, 64
      %v451 = vadd.s32 %v442, 72
      %v452 = vadd.s32 %v442, 80
      %v453 = vadd.s32 %v442, 88
      %v454 = vadd.s32 %v442, 96
      %v455 = vadd.s32 %v442, 104
      %v456 = vadd.s32 %v442, 112
      %v457 = vadd.s32 %v442, 120
      %v458 = vadd.s32 %v442, 128
      %v459 = vadd.s32 %v442, 136
      %v460 = vadd.s32 %v442, 144
      %v461 = vadd.s32 %v442, 152
      %v462 = vadd.s32 %v442, 160
      %v463 = vadd.s32 %v442, 168
      %v464 = vadd.s32 %v442, 176
      %v465 = vadd.s32 %v442, 184
      %v466 = vadd.s32 %v442, 192
      %v467 = vadd.s32 %v442, 200
      %v468 = vadd.s32 %v442, 208
      %v469 = vadd.s32 %v442, 216
      %v470 = vadd.s32 %v442, 224
      %v471 = vadd.s32 %v442, 232
      %v472 = vadd.s32 %v442, 240
      %v473 = vadd.s32 %v442, 248
      %s474 = smul.u32 %s16, 256
      %v475 = vstv %s474
      %v476 = vadd.s32 %v442, %v475
      %v477 = vadd.s32 %v443, %v475
      %v478 = vadd.s32 %v444, %v475
      %v479 = vadd.s32 %v445, %v475
      %v480 = vadd.s32 %v446, %v475
      %v481 = vadd.s32 %v447, %v475
      %v482 = vadd.s32 %v448, %v475
      %v483 = vadd.s32 %v449, %v475
      %v484 = vadd.s32 %v450, %v475
      %v485 = vadd.s32 %v451, %v475
      %v486 = vadd.s32 %v452, %v475
      %v487 = vadd.s32 %v453, %v475
      %v488 = vadd.s32 %v454, %v475
      %v489 = vadd.s32 %v455, %v475
      %v490 = vadd.s32 %v456, %v475
      %v491 = vadd.s32 %v457, %v475
      %v492 = vadd.s32 %v458, %v475
      %v493 = vadd.s32 %v459, %v475
      %v494 = vadd.s32 %v460, %v475
      %v495 = vadd.s32 %v461, %v475
      %v496 = vadd.s32 %v462, %v475
      %v497 = vadd.s32 %v463, %v475
      %v498 = vadd.s32 %v464, %v475
      %v499 = vadd.s32 %v465, %v475
      %v500 = vadd.s32 %v466, %v475
      %v501 = vadd.s32 %v467, %v475
      %v502 = vadd.s32 %v468, %v475
      %v503 = vadd.s32 %v469, %v475
      %v504 = vadd.s32 %v470, %v475
      %v505 = vadd.s32 %v471, %v475
      %v506 = vadd.s32 %v472, %v475
      %v507 = vadd.s32 %v473, %v475
      %vm508 = vcmp.lt.s32.totalorder %v476, 512
      %vm509 = vcmp.lt.s32.totalorder %v477, 512
      %vm510 = vcmp.lt.s32.totalorder %v478, 512
      %vm511 = vcmp.lt.s32.totalorder %v479, 512
      %vm512 = vcmp.lt.s32.totalorder %v480, 512
      %vm513 = vcmp.lt.s32.totalorder %v481, 512
      %vm514 = vcmp.lt.s32.totalorder %v482, 512
      %vm515 = vcmp.lt.s32.totalorder %v483, 512
      %vm516 = vcmp.lt.s32.totalorder %v484, 512
      %vm517 = vcmp.lt.s32.totalorder %v485, 512
      %vm518 = vcmp.lt.s32.totalorder %v486, 512
      %vm519 = vcmp.lt.s32.totalorder %v487, 512
      %vm520 = vcmp.lt.s32.totalorder %v488, 512
      %vm521 = vcmp.lt.s32.totalorder %v489, 512
      %vm522 = vcmp.lt.s32.totalorder %v490, 512
      %vm523 = vcmp.lt.s32.totalorder %v491, 512
      %vm524 = vcmp.lt.s32.totalorder %v492, 512
      %vm525 = vcmp.lt.s32.totalorder %v493, 512
      %vm526 = vcmp.lt.s32.totalorder %v494, 512
      %vm527 = vcmp.lt.s32.totalorder %v495, 512
      %vm528 = vcmp.lt.s32.totalorder %v496, 512
      %vm529 = vcmp.lt.s32.totalorder %v497, 512
      %vm530 = vcmp.lt.s32.totalorder %v498, 512
      %vm531 = vcmp.lt.s32.totalorder %v499, 512
      %vm532 = vcmp.lt.s32.totalorder %v500, 512
      %vm533 = vcmp.lt.s32.totalorder %v501, 512
      %vm534 = vcmp.lt.s32.totalorder %v502, 512
      %vm535 = vcmp.lt.s32.totalorder %v503, 512
      %vm536 = vcmp.lt.s32.totalorder %v504, 512
      %vm537 = vcmp.lt.s32.totalorder %v505, 512
      %vm538 = vcmp.lt.s32.totalorder %v506, 512
      %vm539 = vcmp.lt.s32.totalorder %v507, 512
      %v540 = vsel %vm508, 1, 0
      %v541 = vsel %vm509, 1, 0
      %v542 = vsel %vm510, 1, 0
      %v543 = vsel %vm511, 1, 0
      %v544 = vsel %vm512, 1, 0
      %v545 = vsel %vm513, 1, 0
      %v546 = vsel %vm514, 1, 0
      %v547 = vsel %vm515, 1, 0
      %v548 = vsel %vm516, 1, 0
      %v549 = vsel %vm517, 1, 0
      %v550 = vsel %vm518, 1, 0
      %v551 = vsel %vm519, 1, 0
      %v552 = vsel %vm520, 1, 0
      %v553 = vsel %vm521, 1, 0
      %v554 = vsel %vm522, 1, 0
      %v555 = vsel %vm523, 1, 0
      %v556 = vsel %vm524, 1, 0
      %v557 = vsel %vm525, 1, 0
      %v558 = vsel %vm526, 1, 0
      %v559 = vsel %vm527, 1, 0
      %v560 = vsel %vm528, 1, 0
      %v561 = vsel %vm529, 1, 0
      %v562 = vsel %vm530, 1, 0
      %v563 = vsel %vm531, 1, 0
      %v564 = vsel %vm532, 1, 0
      %v565 = vsel %vm533, 1, 0
      %v566 = vsel %vm534, 1, 0
      %v567 = vsel %vm535, 1, 0
      %v568 = vsel %vm536, 1, 0
      %v569 = vsel %vm537, 1, 0
      %v570 = vsel %vm538, 1, 0
      %v571 = vsel %vm539, 1, 0
      %vm572 = vcmp.eq.s32.totalorder %v540, 1
      %vm573 = vcmp.eq.s32.totalorder %v541, 1
      %vm574 = vcmp.eq.s32.totalorder %v542, 1
      %vm575 = vcmp.eq.s32.totalorder %v543, 1
      %vm576 = vcmp.eq.s32.totalorder %v544, 1
      %vm577 = vcmp.eq.s32.totalorder %v545, 1
      %vm578 = vcmp.eq.s32.totalorder %v546, 1
      %vm579 = vcmp.eq.s32.totalorder %v547, 1
      %vm580 = vcmp.eq.s32.totalorder %v548, 1
      %vm581 = vcmp.eq.s32.totalorder %v549, 1
      %vm582 = vcmp.eq.s32.totalorder %v550, 1
      %vm583 = vcmp.eq.s32.totalorder %v551, 1
      %vm584 = vcmp.eq.s32.totalorder %v552, 1
      %vm585 = vcmp.eq.s32.totalorder %v553, 1
      %vm586 = vcmp.eq.s32.totalorder %v554, 1
      %vm587 = vcmp.eq.s32.totalorder %v555, 1
      %vm588 = vcmp.eq.s32.totalorder %v556, 1
      %vm589 = vcmp.eq.s32.totalorder %v557, 1
      %vm590 = vcmp.eq.s32.totalorder %v558, 1
      %vm591 = vcmp.eq.s32.totalorder %v559, 1
      %vm592 = vcmp.eq.s32.totalorder %v560, 1
      %vm593 = vcmp.eq.s32.totalorder %v561, 1
      %vm594 = vcmp.eq.s32.totalorder %v562, 1
      %vm595 = vcmp.eq.s32.totalorder %v563, 1
      %vm596 = vcmp.eq.s32.totalorder %v564, 1
      %vm597 = vcmp.eq.s32.totalorder %v565, 1
      %vm598 = vcmp.eq.s32.totalorder %v566, 1
      %vm599 = vcmp.eq.s32.totalorder %v567, 1
      %vm600 = vcmp.eq.s32.totalorder %v568, 1
      %vm601 = vcmp.eq.s32.totalorder %v569, 1
      %vm602 = vcmp.eq.s32.totalorder %v570, 1
      %vm603 = vcmp.eq.s32.totalorder %v571, 1
      %v604 = vsel %vm572, %v377, 0.0
      %v605 = vsel %vm573, %v378, 0.0
      %v606 = vsel %vm574, %v379, 0.0
      %v607 = vsel %vm575, %v380, 0.0
      %v608 = vsel %vm576, %v381, 0.0
      %v609 = vsel %vm577, %v382, 0.0
      %v610 = vsel %vm578, %v383, 0.0
      %v611 = vsel %vm579, %v384, 0.0
      %v612 = vsel %vm580, %v385, 0.0
      %v613 = vsel %vm581, %v386, 0.0
      %v614 = vsel %vm582, %v387, 0.0
      %v615 = vsel %vm583, %v388, 0.0
      %v616 = vsel %vm584, %v389, 0.0
      %v617 = vsel %vm585, %v390, 0.0
      %v618 = vsel %vm586, %v391, 0.0
      %v619 = vsel %vm587, %v392, 0.0
      %v620 = vsel %vm588, %v393, 0.0
      %v621 = vsel %vm589, %v394, 0.0
      %v622 = vsel %vm590, %v395, 0.0
      %v623 = vsel %vm591, %v396, 0.0
      %v624 = vsel %vm592, %v397, 0.0
      %v625 = vsel %vm593, %v398, 0.0
      %v626 = vsel %vm594, %v399, 0.0
      %v627 = vsel %vm595, %v400, 0.0
      %v628 = vsel %vm596, %v401, 0.0
      %v629 = vsel %vm597, %v402, 0.0
      %v630 = vsel %vm598, %v403, 0.0
      %v631 = vsel %vm599, %v404, 0.0
      %v632 = vsel %vm600, %v405, 0.0
      %v633 = vsel %vm601, %v406, 0.0
      %v634 = vsel %vm602, %v407, 0.0
      %v635 = vsel %vm603, %v408, 0.0
      %v636 = vadd.f32 %v604, %v605
      %v637 = vadd.f32 %v636, %v606
      %v638 = vadd.f32 %v637, %v607
      %v639 = vadd.f32 %v638, %v608
      %v640 = vadd.f32 %v639, %v609
      %v641 = vadd.f32 %v640, %v610
      %v642 = vadd.f32 %v641, %v611
      %v643 = vadd.f32 %v642, %v612
      %v644 = vadd.f32 %v643, %v613
      %v645 = vadd.f32 %v644, %v614
      %v646 = vadd.f32 %v645, %v615
      %v647 = vadd.f32 %v646, %v616
      %v648 = vadd.f32 %v647, %v617
      %v649 = vadd.f32 %v648, %v618
      %v650 = vadd.f32 %v649, %v619
      %v651 = vadd.f32 %v650, %v620
      %v652 = vadd.f32 %v651, %v621
      %v653 = vadd.f32 %v652, %v622
      %v654 = vadd.f32 %v653, %v623
      %v655 = vadd.f32 %v654, %v624
      %v656 = vadd.f32 %v655, %v625
      %v657 = vadd.f32 %v656, %v626
      %v658 = vadd.f32 %v657, %v627
      %v659 = vadd.f32 %v658, %v628
      %v660 = vadd.f32 %v659, %v629
      %v661 = vadd.f32 %v660, %v630
      %v662 = vadd.f32 %v661, %v631
      %v663 = vadd.f32 %v662, %v632
      %v664 = vadd.f32 %v663, %v633
      %v665 = vadd.f32 %v664, %v634
      %v666 = vadd.f32 %v665, %v635
      %v667 = vrot.slane %v666, 4
      %v668 = vadd.f32 %v666, %v667
      %v669 = vrot.slane %v668, 2
      %v670 = vadd.f32 %v668, %v669
      %v671 = vrot.slane %v670, 1
      %v672 = vadd.f32 %v670, %v671
      %v673 = vmul.f32 %v604, %v604
      %v674 = vmul.f32 %v605, %v605
      %v675 = vmul.f32 %v606, %v606
      %v676 = vmul.f32 %v607, %v607
      %v677 = vmul.f32 %v608, %v608
      %v678 = vmul.f32 %v609, %v609
      %v679 = vmul.f32 %v610, %v610
      %v680 = vmul.f32 %v611, %v611
      %v681 = vmul.f32 %v612, %v612
      %v682 = vmul.f32 %v613, %v613
      %v683 = vmul.f32 %v614, %v614
      %v684 = vmul.f32 %v615, %v615
      %v685 = vmul.f32 %v616, %v616
      %v686 = vmul.f32 %v617, %v617
      %v687 = vmul.f32 %v618, %v618
      %v688 = vmul.f32 %v619, %v619
      %v689 = vmul.f32 %v620, %v620
      %v690 = vmul.f32 %v621, %v621
      %v691 = vmul.f32 %v622, %v622
      %v692 = vmul.f32 %v623, %v623
      %v693 = vmul.f32 %v624, %v624
      %v694 = vmul.f32 %v625, %v625
      %v695 = vmul.f32 %v626, %v626
      %v696 = vmul.f32 %v627, %v627
      %v697 = vmul.f32 %v628, %v628
      %v698 = vmul.f32 %v629, %v629
      %v699 = vmul.f32 %v630, %v630
      %v700 = vmul.f32 %v631, %v631
      %v701 = vmul.f32 %v632, %v632
      %v702 = vmul.f32 %v633, %v633
      %v703 = vmul.f32 %v634, %v634
      %v704 = vmul.f32 %v635, %v635
      %v705 = vadd.f32 %v673, %v674
      %v706 = vadd.f32 %v705, %v675
      %v707 = vadd.f32 %v706, %v676
      %v708 = vadd.f32 %v707, %v677
      %v709 = vadd.f32 %v708, %v678
      %v710 = vadd.f32 %v709, %v679
      %v711 = vadd.f32 %v710, %v680
      %v712 = vadd.f32 %v711, %v681
      %v713 = vadd.f32 %v712, %v682
      %v714 = vadd.f32 %v713, %v683
      %v715 = vadd.f32 %v714, %v684
      %v716 = vadd.f32 %v715, %v685
      %v717 = vadd.f32 %v716, %v686
      %v718 = vadd.f32 %v717, %v687
      %v719 = vadd.f32 %v718, %v688
      %v720 = vadd.f32 %v719, %v689
      %v721 = vadd.f32 %v720, %v690
      %v722 = vadd.f32 %v721, %v691
      %v723 = vadd.f32 %v722, %v692
      %v724 = vadd.f32 %v723, %v693
      %v725 = vadd.f32 %v724, %v694
      %v726 = vadd.f32 %v725, %v695
      %v727 = vadd.f32 %v726, %v696
      %v728 = vadd.f32 %v727, %v697
      %v729 = vadd.f32 %v728, %v698
      %v730 = vadd.f32 %v729, %v699
      %v731 = vadd.f32 %v730, %v700
      %v732 = vadd.f32 %v731, %v701
      %v733 = vadd.f32 %v732, %v702
      %v734 = vadd.f32 %v733, %v703
      %v735 = vadd.f32 %v734, %v704
      %v736 = vrot.slane %v735, 4
      %v737 = vadd.f32 %v735, %v736
      %v738 = vrot.slane %v737, 2
      %v739 = vadd.f32 %v737, %v738
      %v740 = vrot.slane %v739, 1
      %v741 = vadd.f32 %v739, %v740
      %vm742 = vcmp.eq.s32.totalorder %v442, 0
      %v743 = vsel %vm742, %v672, 0.0
      %vm744 = vcmp.eq.s32.totalorder %v442, 1
      %v745 = vsel %vm744, %v741, 0.0
      %v746 = vadd.f32 %v743, %v745
      %747 = vst [vmem:[%s211] sm:$0xff] %v746
      %s748 = smul.u32 32, %s16
      %p749 = scmp.lt.s32.totalorder %s748, 63
      %s750 = scalar_select %p749, %s748, 63
      %s751 = smul.addr %s750, 8
      %s752 = scalar_lea.vmem %s3, %s751
      %p753 = scmp.lt.s32.totalorder %s16, 1
      %s754 = scalar_select %p753, %s16, 1
      %s755 = smul.addr %s754, 8
      %s756 = scalar_lea.vmem %s4, %s755
      // Predicated region
      $region33: #{aspp_block_forward.2} parent=31 // pred_check
        %p757 = pneg %p102
      $region34: #{aspp_block_forward.2} parent=31 // pred_check_branch
        %759 = sbr.rel (%p757) target = $region36
      $region35: #{aspp_block_forward.2} parent=31 // pred_region
        %s760 = smul.u32 32, %s16
      $region36: #{aspp_block_forward.2} parent=31 // pred_fallthru
        _
      // Predicated region
      $region37: #{aspp_block_forward.2} parent=31 // pred_check
        %p761 = pneg %p128
      $region38: #{aspp_block_forward.2} parent=31 // pred_check_branch
        %763 = sbr.rel (%p761) target = $region40
      $region39: #{aspp_block_forward.2} parent=31 // pred_region
        _
      $region40: #{aspp_block_forward.2} parent=31 // pred_fallthru
        _
    $region32: #{aspp_block_forward.2} parent=5 // pred_fallthru
      _
    %p764 = scmp.le.s32.totalorder 2, %s11
    // Predicated region
    $region41: #{aspp_block_forward.2} parent=5 // pred_check
      %p765 = pneg %p764
    $region42: #{aspp_block_forward.2} parent=5 // pred_check_branch
      %767 = sbr.rel (%p765) target = $region44
    $region43: #{aspp_block_forward.2} parent=5 // pred_region
      %s768 = ssub.s32 %s11, 2
      // Predicated region
      $region45: #{aspp_block_forward.2} parent=43 // pred_check
        %p769 = pneg %p108
      $region46: #{aspp_block_forward.2} parent=43 // pred_check_branch
        %771 = sbr.rel (%p769) target = $region48
      $region47: #{aspp_block_forward.2} parent=43 // pred_region
        %s772 = smul.u32 32, %s17
        %p773 = scmp.lt.s32.totalorder %s772, 63
        %s774 = scalar_select %p773, %s772, 63
        %s775 = smul.addr %s774, 8
        %s776 = scalar_lea.vmem %s3, %s775
      $region48: #{aspp_block_forward.2} parent=43 // pred_fallthru
        _
      // Predicated region
      $region49: #{aspp_block_forward.2} parent=43 // pred_check
        %p777 = pneg %p134
      $region50: #{aspp_block_forward.2} parent=43 // pred_check_branch
        %779 = sbr.rel (%p777) target = $region52
      $region51: #{aspp_block_forward.2} parent=43 // pred_region
        %p780 = scmp.lt.s32.totalorder %s17, 1
        %s781 = scalar_select %p780, %s17, 1
        %s782 = smul.addr %s781, 8
        %s783 = scalar_lea.vmem %s4, %s782
      $region52: #{aspp_block_forward.2} parent=43 // pred_fallthru
        _
    $region44: #{aspp_block_forward.2} parent=5 // pred_fallthru
      _
  $region6: #{aspp_block_forward.2} parent=0 // loop_footer
    %s15 = sadd.s32 1, %s11
  $region7: #{aspp_block_forward.2} parent=0 // loop_footer_branch
    %10 = sbr.rel target = $region3
  $region8: #{aspp_block_forward.2} parent=0 // loop_exit
    _

</llo_original>
